<compile_context>
chip_gen: v5e
topology: v5e:2x2
jax: 0.10.0
libtpu: 0.0.40
codegen_flags: <defaults>
</compile_context>

<pallas_src>
import functools

import jax
import jax.numpy as jnp
from jax.experimental import pallas as pl
from jax.experimental.pallas import tpu as pltpu


def _double_conv_kernel(x_ref, t1_ref, b1_ref, t2_ref, b2_ref, out_ref, *, H):
    """One grid step = one batch element (batch dim squeezed out).

    x_ref  : (H+4, W*Cin)        input rows, zero-padded by 2 along H
    t1_ref : (3, W*Cin, W*Cmid)  banded (Toeplitz) conv1 weights, one per ky
    b1_ref : (1, W*Cmid)         conv1 bias tiled across W
    t2_ref : (3, W*Cmid, W*Cout) banded conv2 weights
    b2_ref : (1, W*Cout)         conv2 bias tiled across W
    out_ref: (H, W*Cout)         lane-dense output rows
    """
    x = x_ref[...]                                       # (H+4, W*Cin)

    # ---- conv1: 3 row-banded 2-D MXU matmuls, evaluated on H+2 output rows ----
    acc1 = jnp.dot(x[0:H + 2, :], t1_ref[0],
                   preferred_element_type=jnp.float32)   # (H+2, W*Cmid)
    for ky in (1, 2):
        acc1 = acc1 + jnp.dot(x[ky:ky + H + 2, :], t1_ref[ky],
                              preferred_element_type=jnp.float32)
    h1 = jnp.maximum(acc1 + b1_ref[...], 0.0)            # bias + ReLU, lane dense

    # Zero the two border rows (conv1 rows -1 and H): they become conv2's
    # zero padding along H, so no scratch / re-pad round trip is needed.
    row = jax.lax.broadcasted_iota(jnp.int32, h1.shape, 0)
    h1 = jnp.where((row >= 1) & (row <= H), h1, 0.0)

    # ---- conv2: 3 row-banded 2-D MXU matmuls ----
    acc2 = jnp.dot(h1[0:H, :], t2_ref[0],
                   preferred_element_type=jnp.float32)   # (H, W*Cout)
    for ky in (1, 2):
        acc2 = acc2 + jnp.dot(h1[ky:ky + H, :], t2_ref[ky],
                              preferred_element_type=jnp.float32)
    out = jnp.maximum(acc2 + b2_ref[...], 0.0)
    out_ref[...] = out.astype(out_ref.dtype)


def _banded_weights(w_hwio, W):
    """(3, 3, Ci, Co) HWIO conv weights -> (3, W*Ci, W*Co) banded matrices.

    T[ky, w_in*Ci + ci, w_out*Co + co] = w_hwio[ky, w_in - w_out + 1, ci, co]
    for |w_in - w_out| <= 1, else 0.  One matmul per ky then computes the full
    W-direction 'same' convolution (zero padding included).
    """
    KH, KW, Ci, Co = w_hwio.shape
    diff = jnp.arange(W)[:, None] - jnp.arange(W)[None, :]           # w_in - w_out
    sel = jnp.stack([(diff == (kx - 1)) for kx in range(KW)], axis=0)
    sel = sel.astype(w_hwio.dtype)                                    # (KW, W, W)
    t = jnp.einsum('xab,yxio->yaibo', sel, w_hwio)                    # (KH, W, Ci, W, Co)
    return t.reshape(KH, W * Ci, W * Co)


def double_conv_pallas(x_nchw, w1, b1, w2, b2):
    """x_nchw: (N, Cin, H, W) float32. Returns (N, Cout, H, W)."""
    N, Cin, H, W = x_nchw.shape
    Cmid = w1.shape[-1]
    Cout = w2.shape[-1]

    # NCHW -> lane-dense rows (N, H, W*Cin), zero-padded by 2 along H so the
    # kernel can produce conv1 on H+2 rows and feed conv2 without re-padding.
    x_rows = jnp.transpose(x_nchw, (0, 2, 3, 1)).reshape(N, H, W * Cin)
    x_rows = jnp.pad(x_rows, ((0, 0), (2, 2), (0, 0)))

    t1 = _banded_weights(w1, W)                        # (3, W*Cin,  W*Cmid)
    t2 = _banded_weights(w2, W)                        # (3, W*Cmid, W*Cout)
    b1_row = jnp.tile(b1, W).reshape(1, W * Cmid)      # lane-dense bias rows
    b2_row = jnp.tile(b2, W).reshape(1, W * Cout)

    kernel = functools.partial(_double_conv_kernel, H=H)

    out_rows = pl.pallas_call(
        kernel,
        out_shape=jax.ShapeDtypeStruct((N, H, W * Cout), jnp.float32),
        grid=(N,),                                      # one image per grid step
        in_specs=[
            # batch dim squeezed -> kernel sees clean 2-D tiles
            pl.BlockSpec((None, H + 4, W * Cin), lambda n: (n, 0, 0)),
            # weights/biases: constant index map -> DMA'd once, kept resident
            pl.BlockSpec((3, W * Cin, W * Cmid), lambda n: (0, 0, 0)),
            pl.BlockSpec((1, W * Cmid), lambda n: (0, 0)),
            pl.BlockSpec((3, W * Cmid, W * Cout), lambda n: (0, 0, 0)),
            pl.BlockSpec((1, W * Cout), lambda n: (0, 0)),
        ],
        out_specs=pl.BlockSpec((None, H, W * Cout), lambda n: (n, 0, 0)),
        compiler_params=pltpu.CompilerParams(
            dimension_semantics=("parallel",)),         # megacore split on v7x
    )(x_rows, t1, b1_row, t2, b2_row)

    # lane-dense rows -> NCHW to match the PyTorch module's convention.
    return jnp.transpose(out_rows.reshape(N, H, W, Cout), (0, 3, 1, 2))


def _reference(x_nchw, w1, b1, w2, b2):
    """Pure-JAX reference using lax.conv (NCHW / OIHW like PyTorch)."""
    def conv(x, w_hwio, b):
        w_oihw = jnp.transpose(w_hwio, (3, 2, 0, 1))
        y = jax.lax.conv_general_dilated(
            x, w_oihw, window_strides=(1, 1), padding="SAME",
            dimension_numbers=("NCHW", "OIHW", "NCHW"))
        return jnp.maximum(y + b[None, :, None, None], 0.0)
    return conv(conv(x_nchw, w1, b1), w2, b2)


if __name__ == "__main__":
    # Module config: DoubleConv(in_channels=4, out_channels=8)
    N, Cin, Cout, H, W = 2, 4, 8, 16, 16

    key = jax.random.PRNGKey(0)
    kx, kw1, kb1, kw2, kb2 = jax.random.split(key, 5)

    x = jax.random.normal(kx, (N, Cin, H, W), dtype=jnp.float32)
    # Deterministic parameter init (shapes match nn.Conv2d(k=3, padding=1)).
    w1 = jax.random.normal(kw1, (3, 3, Cin, Cout), dtype=jnp.float32) * 0.1
    b1 = jax.random.normal(kb1, (Cout,), dtype=jnp.float32) * 0.1
    w2 = jax.random.normal(kw2, (3, 3, Cout, Cout), dtype=jnp.float32) * 0.1
    b2 = jax.random.normal(kb2, (Cout,), dtype=jnp.float32) * 0.1

    out = double_conv_pallas(x, w1, b1, w2, b2)
    out = jax.block_until_ready(out)

    ref = _reference(x, w1, b1, w2, b2)
    assert out.shape == (N, Cout, H, W)
    assert jnp.allclose(out, ref, atol=1e-3, rtol=1e-3), "mismatch vs reference"

    print("KERNEL_OK")
</pallas_src>

<mosaic_0001>
module attributes {stable_mosaic.version = 11 : i64} {
  func.func @_double_conv_kernel(%arg0: i32, %arg1: memref<1x20x64xf32, #tpu.memory_space<vmem>>, %arg2: memref<3x64x128xf32, #tpu.memory_space<vmem>>, %arg3: memref<1x128xf32, #tpu.memory_space<vmem>>, %arg4: memref<3x128x128xf32, #tpu.memory_space<vmem>>, %arg5: memref<1x128xf32, #tpu.memory_space<vmem>>, %arg6: memref<1x16x128xf32, #tpu.memory_space<vmem>>) attributes {dimension_semantics = [#tpu.dimension_semantics<parallel>], iteration_bounds = array<i64: 2>, scalar_prefetch = 0 : i64, scratch_operands = 0 : i64, tpu.core_type = #tpu.core_type<tc>, window_params = [{transform_indices = @transform_0, window_bounds = array<i64: 1, 20, 64>}, {pipeline_mode = #tpu.pipeline_mode<synchronous>, transform_indices = @transform_1, window_bounds = array<i64: 3, 64, 128>}, {pipeline_mode = #tpu.pipeline_mode<synchronous>, transform_indices = @transform_2, window_bounds = array<i64: 1, 128>}, {pipeline_mode = #tpu.pipeline_mode<synchronous>, transform_indices = @transform_3, window_bounds = array<i64: 3, 128, 128>}, {pipeline_mode = #tpu.pipeline_mode<synchronous>, transform_indices = @transform_4, window_bounds = array<i64: 1, 128>}, {transform_indices = @transform_5, window_bounds = array<i64: 1, 16, 128>}]} {
    %c0 = arith.constant 0 : index
    %c0_0 = arith.constant 0 : index
    %c0_1 = arith.constant 0 : index
    %0 = vector.load %arg1[%c0, %c0_0, %c0_1] : memref<1x20x64xf32, #tpu.memory_space<vmem>>, vector<1x20x64xf32>
    %1 = vector.shape_cast %0 : vector<1x20x64xf32> to vector<20x64xf32>
    %2 = vector.extract_strided_slice %1 {offsets = [0, 0], sizes = [18, 64], strides = [1, 1]} : vector<20x64xf32> to vector<18x64xf32>
    %c0_2 = arith.constant 0 : index
    %c0_3 = arith.constant 0 : index
    %c0_4 = arith.constant 0 : index
    %3 = vector.load %arg2[%c0_2, %c0_3, %c0_4] : memref<3x64x128xf32, #tpu.memory_space<vmem>>, vector<1x64x128xf32>
    %4 = vector.shape_cast %3 : vector<1x64x128xf32> to vector<64x128xf32>
    %cst = arith.constant dense<0.000000e+00> : vector<18x128xf32>
    %5 = tpu.matmul %2, %4, %cst {dimension_numbers = #tpu.dot_dimension_numbers<[1], [0], [0], [1], [0, 0, 1, 1], [], []>} : vector<18x64xf32>, vector<64x128xf32>, vector<18x128xf32> -> vector<18x128xf32>
    %6 = vector.extract_strided_slice %1 {offsets = [1, 0], sizes = [18, 64], strides = [1, 1]} : vector<20x64xf32> to vector<18x64xf32>
    %c1 = arith.constant 1 : index
    %c0_5 = arith.constant 0 : index
    %c0_6 = arith.constant 0 : index
    %7 = vector.load %arg2[%c1, %c0_5, %c0_6] : memref<3x64x128xf32, #tpu.memory_space<vmem>>, vector<1x64x128xf32>
    %8 = vector.shape_cast %7 : vector<1x64x128xf32> to vector<64x128xf32>
    %cst_7 = arith.constant dense<0.000000e+00> : vector<18x128xf32>
    %9 = tpu.matmul %6, %8, %cst_7 {dimension_numbers = #tpu.dot_dimension_numbers<[1], [0], [0], [1], [0, 0, 1, 1], [], []>} : vector<18x64xf32>, vector<64x128xf32>, vector<18x128xf32> -> vector<18x128xf32>
    %10 = arith.addf %5, %9 : vector<18x128xf32>
    %11 = vector.extract_strided_slice %1 {offsets = [2, 0], sizes = [18, 64], strides = [1, 1]} : vector<20x64xf32> to vector<18x64xf32>
    %c2 = arith.constant 2 : index
    %c0_8 = arith.constant 0 : index
    %c0_9 = arith.constant 0 : index
    %12 = vector.load %arg2[%c2, %c0_8, %c0_9] : memref<3x64x128xf32, #tpu.memory_space<vmem>>, vector<1x64x128xf32>
    %13 = vector.shape_cast %12 : vector<1x64x128xf32> to vector<64x128xf32>
    %cst_10 = arith.constant dense<0.000000e+00> : vector<18x128xf32>
    %14 = tpu.matmul %11, %13, %cst_10 {dimension_numbers = #tpu.dot_dimension_numbers<[1], [0], [0], [1], [0, 0, 1, 1], [], []>} : vector<18x64xf32>, vector<64x128xf32>, vector<18x128xf32> -> vector<18x128xf32>
    %15 = arith.addf %10, %14 : vector<18x128xf32>
    %c0_11 = arith.constant 0 : index
    %c0_12 = arith.constant 0 : index
    %16 = vector.load %arg3[%c0_11, %c0_12] : memref<1x128xf32, #tpu.memory_space<vmem>>, vector<1x128xf32>
    %17 = vector.broadcast %16 : vector<1x128xf32> to vector<18x128xf32>
    %18 = arith.addf %15, %17 : vector<18x128xf32>
    %cst_13 = arith.constant 0.000000e+00 : f32
    %19 = vector.broadcast %cst_13 : f32 to vector<18x128xf32>
    %20 = arith.maximumf %18, %19 : vector<18x128xf32>
    %21 = tpu.iota {dimensions = array<i32: 0>} : vector<18x128xi32>
    %c1_i32 = arith.constant 1 : i32
    %22 = vector.broadcast %c1_i32 : i32 to vector<18x128xi32>
    %23 = arith.cmpi sge, %21, %22 : vector<18x128xi32>
    %c16_i32 = arith.constant 16 : i32
    %24 = vector.broadcast %c16_i32 : i32 to vector<18x128xi32>
    %25 = arith.cmpi sle, %21, %24 : vector<18x128xi32>
    %26 = arith.andi %23, %25 : vector<18x128xi1>
    %cst_14 = arith.constant 0.000000e+00 : f32
    %27 = vector.broadcast %cst_14 : f32 to vector<18x128xf32>
    %28 = arith.select %26, %20, %27 : vector<18x128xi1>, vector<18x128xf32>
    %29 = vector.extract_strided_slice %28 {offsets = [0, 0], sizes = [16, 128], strides = [1, 1]} : vector<18x128xf32> to vector<16x128xf32>
    %c0_15 = arith.constant 0 : index
    %c0_16 = arith.constant 0 : index
    %c0_17 = arith.constant 0 : index
    %30 = vector.load %arg4[%c0_15, %c0_16, %c0_17] : memref<3x128x128xf32, #tpu.memory_space<vmem>>, vector<1x128x128xf32>
    %31 = vector.shape_cast %30 : vector<1x128x128xf32> to vector<128x128xf32>
    %cst_18 = arith.constant dense<0.000000e+00> : vector<16x128xf32>
    %32 = tpu.matmul %29, %31, %cst_18 {dimension_numbers = #tpu.dot_dimension_numbers<[1], [0], [0], [1], [0, 0, 1, 1], [], []>} : vector<16x128xf32>, vector<128x128xf32>, vector<16x128xf32> -> vector<16x128xf32>
    %33 = vector.extract_strided_slice %28 {offsets = [1, 0], sizes = [16, 128], strides = [1, 1]} : vector<18x128xf32> to vector<16x128xf32>
    %c1_19 = arith.constant 1 : index
    %c0_20 = arith.constant 0 : index
    %c0_21 = arith.constant 0 : index
    %34 = vector.load %arg4[%c1_19, %c0_20, %c0_21] : memref<3x128x128xf32, #tpu.memory_space<vmem>>, vector<1x128x128xf32>
    %35 = vector.shape_cast %34 : vector<1x128x128xf32> to vector<128x128xf32>
    %cst_22 = arith.constant dense<0.000000e+00> : vector<16x128xf32>
    %36 = tpu.matmul %33, %35, %cst_22 {dimension_numbers = #tpu.dot_dimension_numbers<[1], [0], [0], [1], [0, 0, 1, 1], [], []>} : vector<16x128xf32>, vector<128x128xf32>, vector<16x128xf32> -> vector<16x128xf32>
    %37 = arith.addf %32, %36 : vector<16x128xf32>
    %38 = vector.extract_strided_slice %28 {offsets = [2, 0], sizes = [16, 128], strides = [1, 1]} : vector<18x128xf32> to vector<16x128xf32>
    %c2_23 = arith.constant 2 : index
    %c0_24 = arith.constant 0 : index
    %c0_25 = arith.constant 0 : index
    %39 = vector.load %arg4[%c2_23, %c0_24, %c0_25] : memref<3x128x128xf32, #tpu.memory_space<vmem>>, vector<1x128x128xf32>
    %40 = vector.shape_cast %39 : vector<1x128x128xf32> to vector<128x128xf32>
    %cst_26 = arith.constant dense<0.000000e+00> : vector<16x128xf32>
    %41 = tpu.matmul %38, %40, %cst_26 {dimension_numbers = #tpu.dot_dimension_numbers<[1], [0], [0], [1], [0, 0, 1, 1], [], []>} : vector<16x128xf32>, vector<128x128xf32>, vector<16x128xf32> -> vector<16x128xf32>
    %42 = arith.addf %37, %41 : vector<16x128xf32>
    %c0_27 = arith.constant 0 : index
    %c0_28 = arith.constant 0 : index
    %43 = vector.load %arg5[%c0_27, %c0_28] : memref<1x128xf32, #tpu.memory_space<vmem>>, vector<1x128xf32>
    %44 = vector.broadcast %43 : vector<1x128xf32> to vector<16x128xf32>
    %45 = arith.addf %42, %44 : vector<16x128xf32>
    %cst_29 = arith.constant 0.000000e+00 : f32
    %46 = vector.broadcast %cst_29 : f32 to vector<16x128xf32>
    %47 = arith.maximumf %45, %46 : vector<16x128xf32>
    %c0_30 = arith.constant 0 : index
    %c0_31 = arith.constant 0 : index
    %c0_32 = arith.constant 0 : index
    %48 = vector.load %arg6[%c0_30, %c0_31, %c0_32] : memref<1x16x128xf32, #tpu.memory_space<vmem>>, vector<1x16x128xf32>
    %49 = vector.shape_cast %48 : vector<1x16x128xf32> to vector<16x128xf32>
    %50 = vector.shape_cast %47 : vector<16x128xf32> to vector<1x16x128xf32>
    tpu.vector_store %arg6[%c0_30, %c0_31, %c0_32], %50 {strides = array<i32>} : memref<1x16x128xf32, #tpu.memory_space<vmem>>, vector<1x16x128xf32>,
    return
  }
  func.func @transform_0(%arg0: i32) -> (i32, i32, i32) {
    %c0_i32 = arith.constant 0 : i32
    %c0_i32_0 = arith.constant 0 : i32
    %c0_i32_1 = arith.constant 0 : i32
    return %arg0, %c0_i32, %c0_i32_0 : i32, i32, i32
  }
  func.func @transform_1(%arg0: i32) -> (i32, i32, i32) {
    %c0_i32 = arith.constant 0 : i32
    %c0_i32_0 = arith.constant 0 : i32
    %c0_i32_1 = arith.constant 0 : i32
    %c0_i32_2 = arith.constant 0 : i32
    return %c0_i32, %c0_i32_0, %c0_i32_1 : i32, i32, i32
  }
  func.func @transform_2(%arg0: i32) -> (i32, i32) {
    %c0_i32 = arith.constant 0 : i32
    %c0_i32_0 = arith.constant 0 : i32
    %c0_i32_1 = arith.constant 0 : i32
    return %c0_i32, %c0_i32_0 : i32, i32
  }
  func.func @transform_3(%arg0: i32) -> (i32, i32, i32) {
    %c0_i32 = arith.constant 0 : i32
    %c0_i32_0 = arith.constant 0 : i32
    %c0_i32_1 = arith.constant 0 : i32
    %c0_i32_2 = arith.constant 0 : i32
    return %c0_i32, %c0_i32_0, %c0_i32_1 : i32, i32, i32
  }
  func.func @transform_4(%arg0: i32) -> (i32, i32) {
    %c0_i32 = arith.constant 0 : i32
    %c0_i32_0 = arith.constant 0 : i32
    %c0_i32_1 = arith.constant 0 : i32
    return %c0_i32, %c0_i32_0 : i32, i32
  }
  func.func @transform_5(%arg0: i32) -> (i32, i32, i32) {
    %c0_i32 = arith.constant 0 : i32
    %c0_i32_0 = arith.constant 0 : i32
    %c0_i32_1 = arith.constant 0 : i32
    return %arg0, %c0_i32, %c0_i32_0 : i32, i32, i32
  }
}

</mosaic_0001>

<llo_original>
// kernel: tpu_custom_call.1
$region0: #{tpu_custom_call.1}
  #allocation0 [shape = 'u32[]', space=smem, size = 0x4, offset = 0x4, fixed_abs, tag = 'smem constant byte address 0x4 - core index']
  #allocation1 [shape = 'u32[72,128]{1,0:T(1,128)}', space=vmem, size = 0x9000, scoped, tag = 'internal scratch']
  %s0 = inlined_call_operand.vmem [shape: f32[2,20,64], index: 0, kind: input, shape index: {}]
  %s1 = inlined_call_operand.hbm [shape: f32[3,64,128], index: 1, kind: input, shape index: {}]
  %s2 = inlined_call_operand.vmem [shape: f32[1,128], index: 2, kind: input, shape index: {}]
  %s3 = inlined_call_operand.hbm [shape: f32[3,128,128], index: 3, kind: input, shape index: {}]
  %s4 = inlined_call_operand.vmem [shape: f32[1,128], index: 4, kind: input, shape index: {}]
  %s5 = inlined_call_operand.hbm [shape: f32[2,16,128], index: 5, kind: output, shape index: {}]
  %s6 = sld [smem:[#allocation0]]
  $region61: #{tpu_custom_call.1} parent=0
    _
  %s8 = ssub.s32 1, %s6
  %s9 = scalar_select 0, %s8, %s6
  $region1: #{tpu_custom_call.1} parent=0
    #allocation2 [shape = 'u8[98304]{0}', space=vmem, size = 0x18000, scoped, tag = 'input window, operand 1, single buffered']
    #allocation3 [shape = 's32[2]{0}', space=sflag, size = 0x8, scoped, tag = 'scoped memory for tpu_custom_call.1']
    #allocation4 [shape = 's32[2]{0}', space=sflag, size = 0x8, scoped, tag = 'scoped memory for tpu_custom_call.1']
    #allocation5 [shape = 'u8[196608]{0}', space=vmem, size = 0x30000, scoped, tag = 'input window, operand 3, single buffered']
    #allocation6 [shape = 's32[1]{0}', space=sflag, size = 0x4, scoped, tag = 'scoped memory for tpu_custom_call.1']
    #allocation7 [shape = 'u8[16384]{0}', space=vmem, size = 0x4000, scoped, tag = 'output window, operand 0']
    %10 = vsyncpa [#allocation3], 0
    %11 = vsyncpa [#allocation6], 0
    %12 = vsyncpa [#allocation4], 0
    %s13 = scalar_lea.sflag [#allocation4], 1
    %14 = vsyncpa %s13, 0
    loop: start=0, step=1, limit=4
    $region2: #{tpu_custom_call.1} parent=1 // loop_pre_header
      _
    $region3: #{tpu_custom_call.1} parent=1 // loop_header
      %s16 = sphi 0, %s20
      %p17 = scmp.ge.s32.totalorder %s16, 4
      %s26 = sphi 0, %s28
      %s29 = sphi 0, %s26
      %s30 = sphi 0, %s29
      %s46 = sphi 0, %s30
      %s50 = sphi 0, %s50
      %s52 = sphi 0, %s50
      %s53 = sphi 0, %s52
      %s67 = sphi 0, %s53
      %s71 = sphi 0, %s71
      %s73 = sphi 0, %s71
      %s74 = sphi 0, %s73
      %s88 = sphi 0, %s74
      %s92 = sphi 0, %s92
      %s94 = sphi 0, %s92
      %s95 = sphi 0, %s94
      %s109 = sphi 0, %s95
      %s113 = sphi 0, %s113
      %s115 = sphi 0, %s113
      %s116 = sphi 0, %s115
      %s130 = sphi 0, %s116
      %s136 = sphi 0, %s138
      %s139 = sphi 0, %s136
      %s140 = sphi 0, %s139
      %s156 = sphi 0, %s140
    $region4: #{tpu_custom_call.1} parent=1 // loop_header_branch
      %19 = sbr.rel (%p17) target = $region8
    $region5: #{tpu_custom_call.1} parent=1 // loop_body
      %s21 = ssub.s32 %s16, 1
      %s22 = ssub.s32 %s16, 2
      %s23 = sadd.s32 %s16, 1
      %s24 = ssub.s32 %s16, %s23
      %p25 = scmp.eq.s32.totalorder %s24, 0
      %s27 = sadd.s32 %s26, 1
      %s28 = scalar_select %p25, %s26, %s27
      %p31 = pneg %p25
      %p32 = scmp.eq.s32.totalorder %s16, 1
      %p33 = por %p31, %p32
      %p34 = scmp.ne.s32.totalorder %s26, %s29
      %p35 = scmp.eq.s32.totalorder %s16, 0
      %p36 = por %p34, %p35
      %p37 = scmp.ne.s32.totalorder %s26, %s29
      %p38 = scmp.eq.s32.totalorder %s21, 1
      %p39 = por %p37, %p38
      %p40 = scmp.ne.s32.totalorder %s29, %s30
      %p41 = scmp.eq.s32.totalorder %s21, 0
      %p42 = por %p40, %p41
      %p43 = scmp.ne.s32.totalorder %s29, %s30
      %p44 = scmp.eq.s32.totalorder %s22, 1
      %p45 = por %p43, %p44
      %p47 = scmp.ne.s32.totalorder %s30, %s46
      %p48 = scmp.eq.s32.totalorder %s22, 0
      %p49 = por %p47, %p48
      %s51 = sadd.s32 %s50, 1
      %p54 = scmp.eq.s32.totalorder %s16, 1
      %p55 = scmp.ne.s32.totalorder %s50, %s52
      %p56 = scmp.eq.s32.totalorder %s16, 0
      %p57 = por %p55, %p56
      %p58 = scmp.ne.s32.totalorder %s50, %s52
      %p59 = scmp.eq.s32.totalorder %s21, 1
      %p60 = por %p58, %p59
      %p61 = scmp.ne.s32.totalorder %s52, %s53
      %p62 = scmp.eq.s32.totalorder %s21, 0
      %p63 = por %p61, %p62
      %p64 = scmp.ne.s32.totalorder %s52, %s53
      %p65 = scmp.eq.s32.totalorder %s22, 1
      %p66 = por %p64, %p65
      %p68 = scmp.ne.s32.totalorder %s53, %s67
      %p69 = scmp.eq.s32.totalorder %s22, 0
      %p70 = por %p68, %p69
      %s72 = sadd.s32 %s71, 1
      %p75 = scmp.eq.s32.totalorder %s16, 1
      %p76 = scmp.ne.s32.totalorder %s71, %s73
      %p77 = scmp.eq.s32.totalorder %s16, 0
      %p78 = por %p76, %p77
      %p79 = scmp.ne.s32.totalorder %s71, %s73
      %p80 = scmp.eq.s32.totalorder %s21, 1
      %p81 = por %p79, %p80
      %p82 = scmp.ne.s32.totalorder %s73, %s74
      %p83 = scmp.eq.s32.totalorder %s21, 0
      %p84 = por %p82, %p83
      %p85 = scmp.ne.s32.totalorder %s73, %s74
      %p86 = scmp.eq.s32.totalorder %s22, 1
      %p87 = por %p85, %p86
      %p89 = scmp.ne.s32.totalorder %s74, %s88
      %p90 = scmp.eq.s32.totalorder %s22, 0
      %p91 = por %p89, %p90
      %s93 = sadd.s32 %s92, 1
      %p96 = scmp.eq.s32.totalorder %s16, 1
      %p97 = scmp.ne.s32.totalorder %s92, %s94
      %p98 = scmp.eq.s32.totalorder %s16, 0
      %p99 = por %p97, %p98
      %p100 = scmp.ne.s32.totalorder %s92, %s94
      %p101 = scmp.eq.s32.totalorder %s21, 1
      %p102 = por %p100, %p101
      %p103 = scmp.ne.s32.totalorder %s94, %s95
      %p104 = scmp.eq.s32.totalorder %s21, 0
      %p105 = por %p103, %p104
      %p106 = scmp.ne.s32.totalorder %s94, %s95
      %p107 = scmp.eq.s32.totalorder %s22, 1
      %p108 = por %p106, %p107
      %p110 = scmp.ne.s32.totalorder %s95, %s109
      %p111 = scmp.eq.s32.totalorder %s22, 0
      %p112 = por %p110, %p111
      %s114 = sadd.s32 %s113, 1
      %p117 = scmp.eq.s32.totalorder %s16, 1
      %p118 = scmp.ne.s32.totalorder %s113, %s115
      %p119 = scmp.eq.s32.totalorder %s16, 0
      %p120 = por %p118, %p119
      %p121 = scmp.ne.s32.totalorder %s113, %s115
      %p122 = scmp.eq.s32.totalorder %s21, 1
      %p123 = por %p121, %p122
      %p124 = scmp.ne.s32.totalorder %s115, %s116
      %p125 = scmp.eq.s32.totalorder %s21, 0
      %p126 = por %p124, %p125
      %p127 = scmp.ne.s32.totalorder %s115, %s116
      %p128 = scmp.eq.s32.totalorder %s22, 1
      %p129 = por %p127, %p128
      %p131 = scmp.ne.s32.totalorder %s116, %s130
      %p132 = scmp.eq.s32.totalorder %s22, 0
      %p133 = por %p131, %p132
      %s134 = ssub.s32 %s16, %s23
      %p135 = scmp.eq.s32.totalorder %s134, 0
      %s137 = sadd.s32 %s136, 1
      %s138 = scalar_select %p135, %s136, %s137
      %p141 = pneg %p135
      %p142 = scmp.eq.s32.totalorder %s16, 1
      %p143 = por %p141, %p142
      %p144 = scmp.ne.s32.totalorder %s136, %s139
      %p145 = scmp.eq.s32.totalorder %s16, 0
      %p146 = por %p144, %p145
      %p147 = scmp.ne.s32.totalorder %s136, %s139
      %p148 = scmp.eq.s32.totalorder %s21, 1
      %p149 = por %p147, %p148
      %p150 = scmp.ne.s32.totalorder %s139, %s140
      %p151 = scmp.eq.s32.totalorder %s21, 0
      %p152 = por %p150, %p151
      %p153 = scmp.ne.s32.totalorder %s139, %s140
      %p154 = scmp.eq.s32.totalorder %s22, 1
      %p155 = por %p153, %p154
      %p157 = scmp.ne.s32.totalorder %s140, %s156
      %p158 = scmp.eq.s32.totalorder %s22, 0
      %p159 = por %p157, %p158
      %p160 = scmp.le.s32.totalorder 1, %s16
      %p161 = scmp.lt.s32.totalorder %s16, 3
      %p162 = pnand %p160, %p161
      %p163 = pneg %p162
      // Predicated region
      $region9: #{tpu_custom_call.1} parent=5 // pred_check
        _
      $region10: #{tpu_custom_call.1} parent=5 // pred_check_branch
        %165 = sbr.rel (%p162) target = $region12
      $region11: #{tpu_custom_call.1} parent=5 // pred_region
        %s166 = ssub.s32 %s16, 1
        // Predicated region
        $region13: #{tpu_custom_call.1} parent=11 // pred_check
          %p167 = pneg %p63
        $region14: #{tpu_custom_call.1} parent=11 // pred_check_branch
          %169 = sbr.rel (%p167) target = $region16
        $region15: #{tpu_custom_call.1} parent=11 // pred_region
          %171 = vsyncadd [#allocation3], 0
          %s172 = sshll.u32 %s1, 4
          %s173 = int_to_ptr.hbm [resolvable:$true] %s172
          %s174 = sshll.u32 [#allocation2], 4
          %s175 = int_to_ptr.vmem [resolvable:$true] %s174
          %180 = dma.hbm_to_vmem [thread:$0]  %s173, 3072, %s175, [#allocation3], 128, 128, 8
        $region16: #{tpu_custom_call.1} parent=11 // pred_fallthru
          _
        // Predicated region
        $region17: #{tpu_custom_call.1} parent=11 // pred_check
          %p181 = pneg %p84
        $region18: #{tpu_custom_call.1} parent=11 // pred_check_branch
          %183 = sbr.rel (%p181) target = $region20
        $region19: #{tpu_custom_call.1} parent=11 // pred_region
          _
        $region20: #{tpu_custom_call.1} parent=11 // pred_fallthru
          _
        // Predicated region
        $region21: #{tpu_custom_call.1} parent=11 // pred_check
          %p184 = pneg %p105
        $region22: #{tpu_custom_call.1} parent=11 // pred_check_branch
          %186 = sbr.rel (%p184) target = $region24
        $region23: #{tpu_custom_call.1} parent=11 // pred_region
          %188 = vsyncadd [#allocation6], 0
          %s189 = sshll.u32 %s3, 4
          %s190 = int_to_ptr.hbm [resolvable:$true] %s189
          %s191 = sshll.u32 [#allocation5], 4
          %s192 = int_to_ptr.vmem [resolvable:$true] %s191
          %197 = dma.hbm_to_vmem [thread:$0]  %s190, 6144, %s192, [#allocation6], 128, 128, 8
        $region24: #{tpu_custom_call.1} parent=11 // pred_fallthru
          _
        // Predicated region
        $region25: #{tpu_custom_call.1} parent=11 // pred_check
          %p198 = pneg %p126
        $region26: #{tpu_custom_call.1} parent=11 // pred_check_branch
          %200 = sbr.rel (%p198) target = $region28
        $region27: #{tpu_custom_call.1} parent=11 // pred_region
          _
        $region28: #{tpu_custom_call.1} parent=11 // pred_fallthru
          _
      $region12: #{tpu_custom_call.1} parent=5 // pred_fallthru
        _
      %p201 = scmp.lt.s32.totalorder %s16, 2
      // Predicated region
      $region29: #{tpu_custom_call.1} parent=5 // pred_check
        %p202 = pneg %p201
      $region30: #{tpu_custom_call.1} parent=5 // pred_check_branch
        %204 = sbr.rel (%p202) target = $region32
      $region31: #{tpu_custom_call.1} parent=5 // pred_region
        // Predicated region
        $region33: #{tpu_custom_call.1} parent=31 // pred_check
          %p205 = pneg %p36
        $region34: #{tpu_custom_call.1} parent=31 // pred_check_branch
          %207 = sbr.rel (%p205) target = $region36
        $region35: #{tpu_custom_call.1} parent=31 // pred_region
          %p208 = scmp.lt.s32.totalorder %s16, 1
          %s209 = scalar_select %p208, %s16, 1
          %s210 = smul.addr %s209, 3
          %s211 = smul.addr %s210, 8
          %s212 = scalar_lea.vmem %s0, %s211
        $region36: #{tpu_custom_call.1} parent=31 // pred_fallthru
          _
      $region32: #{tpu_custom_call.1} parent=5 // pred_fallthru
        _
      %p213 = scmp.le.s32.totalorder 1, %s16
      %p214 = scmp.lt.s32.totalorder %s16, 3
      %p215 = pnand %p213, %p214
      %p216 = pneg %p215
      // Predicated region
      $region37: #{tpu_custom_call.1} parent=5 // pred_check
        _
      $region38: #{tpu_custom_call.1} parent=5 // pred_check_branch
        %218 = sbr.rel (%p215) target = $region40
      $region39: #{tpu_custom_call.1} parent=5 // pred_region
        %s219 = ssub.s32 %s16, 1
        // Predicated region
        $region41: #{tpu_custom_call.1} parent=39 // pred_check
          %p220 = pneg %p63
        $region42: #{tpu_custom_call.1} parent=39 // pred_check_branch
          %222 = sbr.rel (%p220) target = $region44
        $region43: #{tpu_custom_call.1} parent=39 // pred_region
          %224 = dma.done [#allocation3], 3072
        $region44: #{tpu_custom_call.1} parent=39 // pred_fallthru
          _
        // Predicated region
        $region45: #{tpu_custom_call.1} parent=39 // pred_check
          %p225 = pneg %p105
        $region46: #{tpu_custom_call.1} parent=39 // pred_check_branch
          %227 = sbr.rel (%p225) target = $region48
        $region47: #{tpu_custom_call.1} parent=39 // pred_region
          %229 = dma.done [#allocation6], 6144
        $region48: #{tpu_custom_call.1} parent=39 // pred_fallthru
          _
        %p230 = scmp.lt.s32.totalorder %s21, 1
        %s231 = scalar_select %p230, %s21, 1
        %s232 = smul.addr %s231, 3
        %s233 = smul.addr %s232, 8
        %s234 = scalar_lea.vmem %s0, %s233
        %p235 = pneg %p42
        %p236 = pneg %p39
        %p237 = pneg %p63
        %p238 = pneg %p60
        %p239 = pneg %p84
        %p240 = pneg %p81
        %p241 = pneg %p105
        %p242 = pneg %p102
        %p243 = pneg %p126
        %p244 = pneg %p123
        %p245 = pneg %p152
        %p246 = pneg %p149
        %s247 = sand.u32 %s139, 1
        %s248 = scalar_lea.sflag [#allocation4], %s247
        %s249 = sand.u32 %s139, 1
        %s250 = smul.addr %s249, 16
        %s251 = scalar_lea.vmem [#allocation7], %s250
        %p252 = scmp.lt.s32.totalorder %s21, 1
        %s253 = scalar_select %p252, %s21, 1
        %s254 = smul.addr %s253, 3
        %s255 = smul.addr %s254, 8
        %s256 = scalar_lea.vmem %s0, %s255
        %v257 = vld [vmem:[%s256] sm:$0xff]
        %v258 = vld [vmem:[%s256 + $0x8] sm:$0xff]
        %v259 = vld [vmem:[%s256 + $0x10] sm:$0xf]
        %v260 = vld [vmem:[#allocation2] sm:$0xff]
        %v261 = vld [vmem:[#allocation2 + $0x8] sm:$0xff]
        %v262 = vld [vmem:[#allocation2 + $0x10] sm:$0xff]
        %v263 = vld [vmem:[#allocation2 + $0x18] sm:$0xff]
        %v264 = vld [vmem:[#allocation2 + $0x20] sm:$0xff]
        %v265 = vld [vmem:[#allocation2 + $0x28] sm:$0xff]
        %v266 = vld [vmem:[#allocation2 + $0x30] sm:$0xff]
        %v267 = vld [vmem:[#allocation2 + $0x38] sm:$0xff]
        %s268 = scalar_lea.vmem [#allocation2], 64
        %v269 = vld [vmem:[%s268] sm:$0xff]
        %v270 = vld [vmem:[%s268 + $0x8] sm:$0xff]
        %v271 = vld [vmem:[%s268 + $0x10] sm:$0xff]
        %v272 = vld [vmem:[%s268 + $0x18] sm:$0xff]
        %v273 = vld [vmem:[%s268 + $0x20] sm:$0xff]
        %v274 = vld [vmem:[%s268 + $0x28] sm:$0xff]
        %v275 = vld [vmem:[%s268 + $0x30] sm:$0xff]
        %v276 = vld [vmem:[%s268 + $0x38] sm:$0xff]
        %vm280 = vcmask 1046528
        %v281 = vrot.slane %v257, 1
        %v282 = vrot.slane %v258, 1
        %v283 = vsel %vm280, %v281, %v282
        %v284 = vrot.slane %v259, 1
        %v285 = vsel %vm280, %v282, %v284
        %vm286 = vcmask 523264
        %v287 = vsel %vm286, %v283, 0
        %v289 = vsel %vm286, %v285, 0
        %v291 = vsel %vm286, %v284, 0
        %293 = vmatpush.msra.mxu0 0.0
        %294 = vmatpush.msra.mxu0 0.0
        %295 = vmatpush.msra.mxu0 0.0
        %296 = vmatpush.msra.mxu0 0.0
        %297 = vmatpush.msra.mxu0 0.0
        %298 = vmatpush.msra.mxu0 0.0
        %299 = vmatpush.msra.mxu0 0.0
        %300 = vmatpush.msra.mxu0 0.0
        %301 = vmatpush.msra.mxu0 %v276
        %302 = vmatpush.msra.mxu0 %v275
        %303 = vmatpush.msra.mxu0 %v274
        %304 = vmatpush.msra.mxu0 %v273
        %305 = vmatpush.msra.mxu0 %v272
        %306 = vmatpush.msra.mxu0 %v271
        %307 = vmatpush.msra.mxu0 %v270
        %308 = vmatpush.msra.mxu0 %v269
        %309 = vmatmul.f32.gmra.mxu0 %v287
        %v310 = vpop.f32.mrf.mxu0
        %v311 = vadd.f32 0.0, %v310
        %312 = vmatmul.f32.gmra.mxu0 %v289
        %v313 = vpop.f32.mrf.mxu0
        %v314 = vadd.f32 0.0, %v313
        %315 = vmatmul.f32.gmra.mxu0 %v291
        %v316 = vpop.f32.mrf.mxu0
        %v317 = vadd.f32 0.0, %v316
        %318 = vdwg.mxu0
        %v319 = vsel %vm286, %v257, 0
        %v321 = vsel %vm286, %v258, 0
        %v323 = vsel %vm286, %v259, 0
        %325 = vmatpush.msra.mxu0 0.0
        %326 = vmatpush.msra.mxu0 0.0
        %327 = vmatpush.msra.mxu0 0.0
        %328 = vmatpush.msra.mxu0 0.0
        %329 = vmatpush.msra.mxu0 0.0
        %330 = vmatpush.msra.mxu0 0.0
        %331 = vmatpush.msra.mxu0 0.0
        %332 = vmatpush.msra.mxu0 0.0
        %333 = vmatpush.msra.mxu0 %v267
        %334 = vmatpush.msra.mxu0 %v266
        %335 = vmatpush.msra.mxu0 %v265
        %336 = vmatpush.msra.mxu0 %v264
        %337 = vmatpush.msra.mxu0 %v263
        %338 = vmatpush.msra.mxu0 %v262
        %339 = vmatpush.msra.mxu0 %v261
        %340 = vmatpush.msra.mxu0 %v260
        %341 = vmatmul.f32.gmra.mxu0 %v319
        %v342 = vpop.f32.mrf.mxu0
        %v343 = vadd.f32 %v311, %v342
        %344 = vmatmul.f32.gmra.mxu0 %v321
        %v345 = vpop.f32.mrf.mxu0
        %v346 = vadd.f32 %v314, %v345
        %347 = vmatmul.f32.gmra.mxu0 %v323
        %v348 = vpop.f32.mrf.mxu0
        %v349 = vadd.f32 %v317, %v348
        %350 = vdwg.mxu0
        %s351 = scalar_lea.vmem [#allocation2], 128
        %v352 = vld [vmem:[%s351] sm:$0xff]
        %v353 = vld [vmem:[%s351 + $0x8] sm:$0xff]
        %v354 = vld [vmem:[%s351 + $0x10] sm:$0xff]
        %v355 = vld [vmem:[%s351 + $0x18] sm:$0xff]
        %v356 = vld [vmem:[%s351 + $0x20] sm:$0xff]
        %v357 = vld [vmem:[%s351 + $0x28] sm:$0xff]
        %v358 = vld [vmem:[%s351 + $0x30] sm:$0xff]
        %v359 = vld [vmem:[%s351 + $0x38] sm:$0xff]
        %vm360 = vcmask 1045504
        %v361 = vrot.slane %v257, 2
        %v362 = vrot.slane %v258, 2
        %v363 = vsel %vm360, %v361, %v362
        %v364 = vrot.slane %v259, 2
        %v365 = vsel %vm360, %v362, %v364
        %v366 = vsel %vm286, %v363, 0
        %v368 = vsel %vm286, %v365, 0
        %v370 = vsel %vm286, %v364, 0
        %372 = vmatpush.msra.mxu0 0.0
        %373 = vmatpush.msra.mxu0 0.0
        %374 = vmatpush.msra.mxu0 0.0
        %375 = vmatpush.msra.mxu0 0.0
        %376 = vmatpush.msra.mxu0 0.0
        %377 = vmatpush.msra.mxu0 0.0
        %378 = vmatpush.msra.mxu0 0.0
        %379 = vmatpush.msra.mxu0 0.0
        %380 = vmatpush.msra.mxu0 %v359
        %381 = vmatpush.msra.mxu0 %v358
        %382 = vmatpush.msra.mxu0 %v357
        %383 = vmatpush.msra.mxu0 %v356
        %384 = vmatpush.msra.mxu0 %v355
        %385 = vmatpush.msra.mxu0 %v354
        %386 = vmatpush.msra.mxu0 %v353
        %387 = vmatpush.msra.mxu0 %v352
        %388 = vmatmul.f32.gmra.mxu0 %v366
        %v389 = vpop.f32.mrf.mxu0
        %v390 = vadd.f32 0.0, %v389
        %391 = vmatmul.f32.gmra.mxu0 %v368
        %v392 = vpop.f32.mrf.mxu0
        %v393 = vadd.f32 0.0, %v392
        %394 = vmatmul.f32.gmra.mxu0 %v370
        %v395 = vpop.f32.mrf.mxu0
        %v396 = vadd.f32 0.0, %v395
        %397 = vdwg.mxu0
        %v398 = vadd.f32 %v343, %v390
        %v399 = vadd.f32 %v346, %v393
        %v400 = vadd.f32 %v349, %v396
        %v401 = vld [vmem:[%s2] sm:$0x1]
        %v403 = vperm.slane %v401, 0
        %v405 = vadd.f32 %v398, %v403
        %v406 = vadd.f32 %v399, %v403
        %v407 = vadd.f32 %v400, %v403
        %v408 = vmax.f32 %v405, 0.0
        %v409 = vmax.f32 %v406, 0.0
        %v410 = vmax.f32 %v407, 0.0
        %v411 = vlaneseq
        %v412 = vshrl.u32 %v411, 7
        %v413 = vadd.s32 %v412, 8
        %v414 = vadd.s32 %v412, 16
        %vm415 = vcmp.ge.s32.totalorder %v412, 1
        %vm416 = vcmp.ge.s32.totalorder %v413, 1
        %vm417 = vcmp.ge.s32.totalorder %v414, 1
        %vm418 = vcmp.le.s32.totalorder %v412, 16
        %vm419 = vcmp.le.s32.totalorder %v413, 16
        %vm420 = vcmp.le.s32.totalorder %v414, 16
        %vm421 = vmand %vm415, %vm418
        %vm422 = vmand %vm416, %vm419
        %vm423 = vmand %vm417, %vm420
        %v424 = vsel %vm421, %v408, 0.0
        %v425 = vsel %vm422, %v409, 0.0
        %v426 = vsel %vm423, %v410, 0.0
        %v427 = vld [vmem:[#allocation5] sm:$0xff]
        %v428 = vld [vmem:[#allocation5 + $0x8] sm:$0xff]
        %v429 = vld [vmem:[#allocation5 + $0x10] sm:$0xff]
        %v430 = vld [vmem:[#allocation5 + $0x18] sm:$0xff]
        %v431 = vld [vmem:[#allocation5 + $0x20] sm:$0xff]
        %v432 = vld [vmem:[#allocation5 + $0x28] sm:$0xff]
        %v433 = vld [vmem:[#allocation5 + $0x30] sm:$0xff]
        %v434 = vld [vmem:[#allocation5 + $0x38] sm:$0xff]
        %v435 = vld [vmem:[#allocation5 + $0x40] sm:$0xff]
        %v436 = vld [vmem:[#allocation5 + $0x48] sm:$0xff]
        %v437 = vld [vmem:[#allocation5 + $0x50] sm:$0xff]
        %v438 = vld [vmem:[#allocation5 + $0x58] sm:$0xff]
        %v439 = vld [vmem:[#allocation5 + $0x60] sm:$0xff]
        %v440 = vld [vmem:[#allocation5 + $0x68] sm:$0xff]
        %v441 = vld [vmem:[#allocation5 + $0x70] sm:$0xff]
        %v442 = vld [vmem:[#allocation5 + $0x78] sm:$0xff]
        %s443 = scalar_lea.vmem [#allocation5], 128
        %v444 = vld [vmem:[%s443] sm:$0xff]
        %v445 = vld [vmem:[%s443 + $0x8] sm:$0xff]
        %v446 = vld [vmem:[%s443 + $0x10] sm:$0xff]
        %v447 = vld [vmem:[%s443 + $0x18] sm:$0xff]
        %v448 = vld [vmem:[%s443 + $0x20] sm:$0xff]
        %v449 = vld [vmem:[%s443 + $0x28] sm:$0xff]
        %v450 = vld [vmem:[%s443 + $0x30] sm:$0xff]
        %v451 = vld [vmem:[%s443 + $0x38] sm:$0xff]
        %v452 = vld [vmem:[%s443 + $0x40] sm:$0xff]
        %v453 = vld [vmem:[%s443 + $0x48] sm:$0xff]
        %v454 = vld [vmem:[%s443 + $0x50] sm:$0xff]
        %v455 = vld [vmem:[%s443 + $0x58] sm:$0xff]
        %v456 = vld [vmem:[%s443 + $0x60] sm:$0xff]
        %v457 = vld [vmem:[%s443 + $0x68] sm:$0xff]
        %v458 = vld [vmem:[%s443 + $0x70] sm:$0xff]
        %v459 = vld [vmem:[%s443 + $0x78] sm:$0xff]
        %v463 = vrot.slane %v424, 1
        %v464 = vrot.slane %v425, 1
        %v465 = vsel %vm280, %v463, %v464
        %v466 = vrot.slane %v426, 1
        %v467 = vsel %vm280, %v464, %v466
        %470 = vmatpush.msra.mxu0 %v459
        %471 = vmatpush.msra.mxu0 %v458
        %472 = vmatpush.msra.mxu0 %v457
        %473 = vmatpush.msra.mxu0 %v456
        %474 = vmatpush.msra.mxu0 %v455
        %475 = vmatpush.msra.mxu0 %v454
        %476 = vmatpush.msra.mxu0 %v453
        %477 = vmatpush.msra.mxu0 %v452
        %478 = vmatpush.msra.mxu0 %v451
        %479 = vmatpush.msra.mxu0 %v450
        %480 = vmatpush.msra.mxu0 %v449
        %481 = vmatpush.msra.mxu0 %v448
        %482 = vmatpush.msra.mxu0 %v447
        %483 = vmatpush.msra.mxu0 %v446
        %484 = vmatpush.msra.mxu0 %v445
        %485 = vmatpush.msra.mxu0 %v444
        %486 = vmatmul.f32.gmra.mxu0 %v465
        %v487 = vpop.f32.mrf.mxu0
        %v488 = vadd.f32 0.0, %v487
        %489 = vmatmul.f32.gmra.mxu0 %v467
        %v490 = vpop.f32.mrf.mxu0
        %v491 = vadd.f32 0.0, %v490
        %492 = vdwg.mxu0
        %493 = vmatpush.msra.mxu0 %v442
        %494 = vmatpush.msra.mxu0 %v441
        %495 = vmatpush.msra.mxu0 %v440
        %496 = vmatpush.msra.mxu0 %v439
        %497 = vmatpush.msra.mxu0 %v438
        %498 = vmatpush.msra.mxu0 %v437
        %499 = vmatpush.msra.mxu0 %v436
        %500 = vmatpush.msra.mxu0 %v435
        %501 = vmatpush.msra.mxu0 %v434
        %502 = vmatpush.msra.mxu0 %v433
        %503 = vmatpush.msra.mxu0 %v432
        %504 = vmatpush.msra.mxu0 %v431
        %505 = vmatpush.msra.mxu0 %v430
        %506 = vmatpush.msra.mxu0 %v429
        %507 = vmatpush.msra.mxu0 %v428
        %508 = vmatpush.msra.mxu0 %v427
        %509 = vmatmul.f32.gmra.mxu0 %v424
        %v510 = vpop.f32.mrf.mxu0
        %v511 = vadd.f32 %v488, %v510
        %512 = vmatmul.f32.gmra.mxu0 %v425
        %v513 = vpop.f32.mrf.mxu0
        %v514 = vadd.f32 %v491, %v513
        %515 = vdwg.mxu0
        %s516 = scalar_lea.vmem [#allocation5], 256
        %v517 = vld [vmem:[%s516] sm:$0xff]
        %v518 = vld [vmem:[%s516 + $0x8] sm:$0xff]
        %v519 = vld [vmem:[%s516 + $0x10] sm:$0xff]
        %v520 = vld [vmem:[%s516 + $0x18] sm:$0xff]
        %v521 = vld [vmem:[%s516 + $0x20] sm:$0xff]
        %v522 = vld [vmem:[%s516 + $0x28] sm:$0xff]
        %v523 = vld [vmem:[%s516 + $0x30] sm:$0xff]
        %v524 = vld [vmem:[%s516 + $0x38] sm:$0xff]
        %v525 = vld [vmem:[%s516 + $0x40] sm:$0xff]
        %v526 = vld [vmem:[%s516 + $0x48] sm:$0xff]
        %v527 = vld [vmem:[%s516 + $0x50] sm:$0xff]
        %v528 = vld [vmem:[%s516 + $0x58] sm:$0xff]
        %v529 = vld [vmem:[%s516 + $0x60] sm:$0xff]
        %v530 = vld [vmem:[%s516 + $0x68] sm:$0xff]
        %v531 = vld [vmem:[%s516 + $0x70] sm:$0xff]
        %v532 = vld [vmem:[%s516 + $0x78] sm:$0xff]
        %v533 = vrot.slane %v424, 2
        %v534 = vrot.slane %v425, 2
        %v535 = vsel %vm360, %v533, %v534
        %v536 = vrot.slane %v426, 2
        %v537 = vsel %vm360, %v534, %v536
        %540 = vmatpush.msra.mxu0 %v532
        %541 = vmatpush.msra.mxu0 %v531
        %542 = vmatpush.msra.mxu0 %v530
        %543 = vmatpush.msra.mxu0 %v529
        %544 = vmatpush.msra.mxu0 %v528
        %545 = vmatpush.msra.mxu0 %v527
        %546 = vmatpush.msra.mxu0 %v526
        %547 = vmatpush.msra.mxu0 %v525
        %548 = vmatpush.msra.mxu0 %v524
        %549 = vmatpush.msra.mxu0 %v523
        %550 = vmatpush.msra.mxu0 %v522
        %551 = vmatpush.msra.mxu0 %v521
        %552 = vmatpush.msra.mxu0 %v520
        %553 = vmatpush.msra.mxu0 %v519
        %554 = vmatpush.msra.mxu0 %v518
        %555 = vmatpush.msra.mxu0 %v517
        %556 = vmatmul.f32.gmra.mxu0 %v535
        %v557 = vpop.f32.mrf.mxu0
        %v558 = vadd.f32 0.0, %v557
        %559 = vmatmul.f32.gmra.mxu0 %v537
        %v560 = vpop.f32.mrf.mxu0
        %v561 = vadd.f32 0.0, %v560
        %562 = vdwg.mxu0
        %v563 = vadd.f32 %v511, %v558
        %v564 = vadd.f32 %v514, %v561
        %v565 = vld [vmem:[%s4] sm:$0x1]
        %v567 = vperm.slane %v565, 0
        %v569 = vadd.f32 %v563, %v567
        %v570 = vadd.f32 %v564, %v567
        %v571 = vmax.f32 %v569, 0.0
        %v572 = vmax.f32 %v570, 0.0
        %573 = vst [vmem:[%s251] sm:$0xff] %v571
        %574 = vst [vmem:[%s251 + $0x8] sm:$0xff] %v572
        %s575 = sand.u32 %s139, 1
        %s576 = scalar_lea.sflag [#allocation4], %s575
        %s577 = sand.u32 %s139, 1
        %s578 = smul.addr %s577, 16
        %s579 = scalar_lea.vmem [#allocation7], %s578
        // Predicated region
        $region49: #{tpu_custom_call.1} parent=39 // pred_check
          %p580 = pneg %p149
        $region50: #{tpu_custom_call.1} parent=39 // pred_check_branch
          %582 = sbr.rel (%p580) target = $region52
        $region51: #{tpu_custom_call.1} parent=39 // pred_region
          %584 = vsyncadd %s576, 0
          %s585 = smul.addr %s21, 2
          %s586 = smul.addr %s585, 8
          %s587 = scalar_lea.hbm %s5, %s586
          %s588 = sshll.u32 %s579, 4
          %s589 = int_to_ptr.vmem [resolvable:$true] %s588
          %s590 = sshll.u32 %s587, 4
          %s591 = int_to_ptr.hbm [resolvable:$true] %s590
          %596 = dma.vmem_to_hbm [thread:$0]  %s589, 256, %s591, %s576, 128, 128, 8
        $region52: #{tpu_custom_call.1} parent=39 // pred_fallthru
          _
      $region40: #{tpu_custom_call.1} parent=5 // pred_fallthru
        _
      %p597 = scmp.le.s32.totalorder 2, %s16
      // Predicated region
      $region53: #{tpu_custom_call.1} parent=5 // pred_check
        %p598 = pneg %p597
      $region54: #{tpu_custom_call.1} parent=5 // pred_check_branch
        %600 = sbr.rel (%p598) target = $region56
      $region55: #{tpu_custom_call.1} parent=5 // pred_region
        %s601 = ssub.s32 %s16, 2
        // Predicated region
        $region57: #{tpu_custom_call.1} parent=55 // pred_check
          %p602 = pneg %p155
        $region58: #{tpu_custom_call.1} parent=55 // pred_check_branch
          %604 = sbr.rel (%p602) target = $region60
        $region59: #{tpu_custom_call.1} parent=55 // pred_region
          %s605 = sand.u32 %s140, 1
          %s606 = scalar_lea.sflag [#allocation4], %s605
          %s607 = sand.u32 %s140, 1
          %s608 = smul.addr %s607, 16
          %s609 = scalar_lea.vmem [#allocation7], %s608
          %611 = dma.done %s606, 256
        $region60: #{tpu_custom_call.1} parent=55 // pred_fallthru
          _
      $region56: #{tpu_custom_call.1} parent=5 // pred_fallthru
        _
    $region6: #{tpu_custom_call.1} parent=1 // loop_footer
      %s20 = sadd.s32 1, %s16
    $region7: #{tpu_custom_call.1} parent=1 // loop_footer_branch
      %15 = sbr.rel target = $region3
    $region8: #{tpu_custom_call.1} parent=1 // loop_exit
      _
    %612 = vsyncpa [#allocation3], 1
    %s613 = scalar_lea.sflag [#allocation3], 1
    %614 = vsyncpa %s613, 1
    %615 = vsyncpa [#allocation6], 1
    %616 = vsyncpa [#allocation4], 1
    %s617 = scalar_lea.sflag [#allocation4], 1
    %618 = vsyncpa %s617, 1

</llo_original>
